<compile_context>
chip_gen: v7x
topology: tpu7x:2x2x1
jax: 0.10.0
libtpu: 0.0.40
codegen_flags: <defaults>
</compile_context>

<pallas_src>
import jax
import jax.numpy as jnp
from jax.experimental import pallas as pl
from jax.experimental.pallas import tpu as pltpu


# ---------------------------------------------------------------------------
# Kernels
# ---------------------------------------------------------------------------
def _fused_flow_kernel(e_ref, o_ref,
                       w1a_ref, b1a_ref, w2a_ref, b2a_ref, w3a_ref, b3a_ref,
                       w1b_ref, b1b_ref, w2b_ref, b2b_ref, w3b_ref, b3b_ref,
                       es_e_ref, es_o_ref,
                       e_out_ref, o_out_ref):
    """Fused: coupling(mask=True) -> coupling(mask=False) -> x * exp(scale).

    e / o are the even / odd interleaved lanes of x, de-interleaved once
    outside and zero-padded to a lane-dense width.  es_e / es_o are the
    matching halves of exp(scale), precomputed outside (parameter-only work).
    """
    e = e_ref[...]
    o = o_ref[...]

    def mlp(v, w1_ref, b1_ref, w2_ref, b2_ref, w3_ref, b3_ref):
        w1 = w1_ref[...]
        h = jnp.dot(v.astype(w1.dtype), w1,
                    preferred_element_type=jnp.float32) + b1_ref[...]
        h = jnp.maximum(h, 0.0)
        w2 = w2_ref[...]
        h = jnp.dot(h.astype(w2.dtype), w2,
                    preferred_element_type=jnp.float32) + b2_ref[...]
        h = jnp.maximum(h, 0.0)
        w3 = w3_ref[...]
        return jnp.dot(h.astype(w3.dtype), w3,
                       preferred_element_type=jnp.float32) + b3_ref[...]

    # step 1 (mask=True):  on = even half, off = odd half
    e = e + mlp(o, w1a_ref, b1a_ref, w2a_ref, b2a_ref, w3a_ref, b3a_ref)
    # step 2 (mask=False): on = odd half, off = (already-updated) even half
    o = o + mlp(e, w1b_ref, b1b_ref, w2b_ref, b2b_ref, w3b_ref, b3b_ref)
    # step 3 (final): multiply by precomputed exp(scale).
    e_out_ref[...] = e * es_e_ref[...]
    o_out_ref[...] = o * es_o_ref[...]


def _coupling_kernel(on_ref, off_ref, w1_ref, b1_ref, w2_ref, b2_ref,
                     w3_ref, b3_ref, on_out_ref):
    """Single NICE step: on_out = on + MLP(off)."""
    off = off_ref[...]
    w1 = w1_ref[...]
    h = jnp.dot(off.astype(w1.dtype), w1,
                preferred_element_type=jnp.float32) + b1_ref[...]
    h = jnp.maximum(h, 0.0)
    w2 = w2_ref[...]
    h = jnp.dot(h.astype(w2.dtype), w2,
                preferred_element_type=jnp.float32) + b2_ref[...]
    h = jnp.maximum(h, 0.0)
    w3 = w3_ref[...]
    delta = jnp.dot(h.astype(w3.dtype), w3,
                    preferred_element_type=jnp.float32) + b3_ref[...]
    on_out_ref[...] = on_ref[...] + delta


def _scale_kernel(x_ref, es_ref, y_ref):
    """Final step multiply; exp(scale) and log_det are precomputed outside."""
    y_ref[...] = x_ref[...] * es_ref[...]


# ---------------------------------------------------------------------------
# Helpers
# ---------------------------------------------------------------------------
def _round_up(n, m):
    return ((n + m - 1) // m) * m


def _pad_rc(arr, rows, cols):
    r, c = arr.shape
    return jnp.pad(arr, ((0, rows - r), (0, cols - c)))


def _choose_batch_tile(B):
    """Batch tile: MXU-friendly multiple of 8, biased toward >= 2 grid steps
    (so v7x's two TensorCores both get work) with modest tail padding."""
    B8 = max(8, _round_up(B, 8))
    candidates = (512, 256, 128, 64, 32, 16, 8)
    for tb in candidates:                       # >=2 steps and <=25% padding waste
        steps = -(-B8 // tb)
        pad = steps * tb - B8
        if steps >= 2 and pad * 4 <= B8:
            return tb
    for tb in candidates:                       # fall back: just >=2 steps
        if -(-B8 // tb) >= 2:
            return tb
    return 8                                    # tiny batch: single step


def _compiler_params(need_bytes):
    """Explicit VMEM budget: resident (possibly double-buffered) weights plus
    activation tiles.  Clamped to 64 MiB so the request is valid on v7x."""
    limit = int(min(max(need_bytes + (4 << 20), 32 << 20), 64 << 20))
    return pltpu.CompilerParams(dimension_semantics=("parallel",),
                                vmem_limit_bytes=limit)


def _weight_bytes(*arrs):
    return int(sum(a.size * a.dtype.itemsize for a in arrs))


# ---------------------------------------------------------------------------
# Per-step module (same forward semantics as the PyTorch NiceFlow)
# ---------------------------------------------------------------------------
class NiceFlowPallas:
    def __init__(self, dim, mask, final=False, key=None,
                 param_dtype=jnp.float32):
        self.final = final
        self.dim = dim
        if final:
            # nn.Parameter(torch.zeros(1, dim))
            self.scale = jnp.zeros((1, dim), jnp.float32)
            return
        self.mask = mask
        if key is None:
            key = jax.random.PRNGKey(0)
        k1, k2, k3 = jax.random.split(key, 3)
        half = dim // 2
        hid = dim * 5
        self.half = half
        self.half_pad = _round_up(half, 128)     # lane-pad the coupling halves
        self.hid_pad = _round_up(hid, 128)       # lane-pad the hidden dim
        w1 = 0.1 * jax.random.normal(k1, (half, hid), jnp.float32)
        w2 = 0.1 * jax.random.normal(k2, (hid, hid), jnp.float32)
        w3 = 0.1 * jax.random.normal(k3, (hid, half), jnp.float32)
        # Raw f32 weights kept for the in-script pure-JAX reference.
        self.w1_raw, self.w2_raw, self.w3_raw = w1, w2, w3
        # Zero-padded, (in, out)-layout weights used by the kernels (exact).
        self.w1 = _pad_rc(w1, self.half_pad, self.hid_pad).astype(param_dtype)
        self.w2 = _pad_rc(w2, self.hid_pad, self.hid_pad).astype(param_dtype)
        self.w3 = _pad_rc(w3, self.hid_pad, self.half_pad).astype(param_dtype)
        self.b1 = jnp.zeros((1, self.hid_pad), jnp.float32)
        self.b2 = jnp.zeros((1, self.hid_pad), jnp.float32)
        self.b3 = jnp.zeros((1, self.half_pad), jnp.float32)

    # -- Pallas forward (one flow step) --------------------------------------
    # NOTE: production use should prefer NiceFlowStackPallas (fused, no HBM
    # ping-pong / per-step stride-2 interleave); this path keeps the exact
    # module-level semantics of the PyTorch forward.
    def __call__(self, x):
        B, W = x.shape
        if self.final:
            return _final_scale_call(x, self.scale)

        half = W // 2
        xr = x.reshape(B, half, 2)
        if self.mask:
            on, off = xr[:, :, 0], xr[:, :, 1]
        else:
            off, on = xr[:, :, 0], xr[:, :, 1]

        on_new = _coupling_call(on, off, self)

        if self.mask:
            out = jnp.stack((on_new, off), axis=2)
        else:
            out = jnp.stack((off, on_new), axis=2)
        return out.reshape(B, W), 0


def _coupling_call(on, off, p):
    B, half = on.shape
    tb = _choose_batch_tile(B)
    steps = pl.cdiv(B, tb)
    B_pad = steps * tb
    hp = p.half_pad

    on_p = jnp.pad(on, ((0, B_pad - B), (0, hp - half)))
    off_p = jnp.pad(off, ((0, B_pad - B), (0, hp - half)))

    row_spec = pl.BlockSpec((tb, hp), lambda i: (i, 0))
    const_spec = lambda arr: pl.BlockSpec(arr.shape, lambda i: (0, 0))

    wb = _weight_bytes(p.w1, p.w2, p.w3, p.b1, p.b2, p.b3)
    flops = int(2 * B_pad * (hp * p.hid_pad + p.hid_pad * p.hid_pad
                             + p.hid_pad * hp))
    bytes_acc = int(3 * B_pad * hp * 4 + wb)

    out = pl.pallas_call(
        _coupling_kernel,
        out_shape=jax.ShapeDtypeStruct((B_pad, hp), on.dtype),
        grid=(steps,),
        in_specs=[row_spec, row_spec,
                  const_spec(p.w1), const_spec(p.b1),
                  const_spec(p.w2), const_spec(p.b2),
                  const_spec(p.w3), const_spec(p.b3)],
        out_specs=row_spec,
        compiler_params=_compiler_params(2 * wb
                                         + 6 * tb * max(hp, p.hid_pad) * 4),
        cost_estimate=pl.CostEstimate(flops=flops, transcendentals=0,
                                      bytes_accessed=bytes_acc),
    )(on_p, off_p, p.w1, p.b1, p.w2, p.b2, p.w3, p.b3)
    return out[:B, :half]


def _final_scale_call(x, scale):
    B, W = x.shape
    tb = _choose_batch_tile(B)
    steps = pl.cdiv(B, tb)
    B_pad = steps * tb
    W_pad = _round_up(W, 128)

    x_p = jnp.pad(x, ((0, B_pad - B), (0, W_pad - W)))
    exp_scale = jnp.pad(jnp.exp(scale), ((0, 0), (0, W_pad - W)))
    log_det = jnp.sum(scale)                    # parameter-only: no kernel

    y = pl.pallas_call(
        _scale_kernel,
        out_shape=jax.ShapeDtypeStruct((B_pad, W_pad), x.dtype),
        grid=(steps,),
        in_specs=[pl.BlockSpec((tb, W_pad), lambda i: (i, 0)),
                  pl.BlockSpec((1, W_pad), lambda i: (0, 0))],
        out_specs=pl.BlockSpec((tb, W_pad), lambda i: (i, 0)),
        compiler_params=_compiler_params(8 * tb * W_pad * 4),
        cost_estimate=pl.CostEstimate(flops=int(B_pad * W_pad),
                                      transcendentals=0,
                                      bytes_accessed=int(3 * B_pad * W_pad * 4)),
    )(x_p, exp_scale)
    return y[:B, :W], log_det


# ---------------------------------------------------------------------------
# Fused 3-step stack: coupling(True) -> coupling(False) -> final, ONE kernel
# ---------------------------------------------------------------------------
class NiceFlowStackPallas:
    def __init__(self, flow_a, flow_b, flow_final):
        assert (not flow_a.final) and flow_a.mask
        assert (not flow_b.final) and (not flow_b.mask)
        assert flow_final.final
        self.a = flow_a
        self.b = flow_b
        self.scale = flow_final.scale
        self._fwd = jax.jit(self._forward)

    def _forward(self, x):
        a, b = self.a, self.b
        B, W = x.shape
        half = W // 2
        hp = a.half_pad
        hidp = a.hid_pad
        tb = _choose_batch_tile(B)
        steps = pl.cdiv(B, tb)
        B_pad = steps * tb

        # One-time de-interleave + lane/batch zero-pad (layout only, once).
        xr = x.reshape(B, half, 2)
        e = jnp.pad(xr[:, :, 0], ((0, B_pad - B), (0, hp - half)))
        o = jnp.pad(xr[:, :, 1], ((0, B_pad - B), (0, hp - half)))

        # Parameter-only work hoisted out of the kernel.
        es = jnp.exp(self.scale).reshape(1, half, 2)
        es_e = jnp.pad(es[:, :, 0], ((0, 0), (0, hp - half)))
        es_o = jnp.pad(es[:, :, 1], ((0, 0), (0, hp - half)))
        log_det = jnp.sum(self.scale)

        row_spec = pl.BlockSpec((tb, hp), lambda i: (i, 0))
        const_spec = lambda arr: pl.BlockSpec(arr.shape, lambda i: (0, 0))

        wb = _weight_bytes(a.w1, a.w2, a.w3, a.b1, a.b2, a.b3,
                           b.w1, b.w2, b.w3, b.b1, b.b2, b.b3)
        flops = int(2 * 2 * B_pad * (hp * hidp + hidp * hidp + hidp * hp))
        bytes_acc = int(4 * B_pad * hp * 4 + 2 * hp * 4 + wb)

        e_out, o_out = pl.pallas_call(
            _fused_flow_kernel,
            out_shape=(jax.ShapeDtypeStruct((B_pad, hp), x.dtype),
                       jax.ShapeDtypeStruct((B_pad, hp), x.dtype)),
            grid=(steps,),
            in_specs=[row_spec, row_spec,
                      const_spec(a.w1), const_spec(a.b1),
                      const_spec(a.w2), const_spec(a.b2),
                      const_spec(a.w3), const_spec(a.b3),
                      const_spec(b.w1), const_spec(b.b1),
                      const_spec(b.w2), const_spec(b.b2),
                      const_spec(b.w3), const_spec(b.b3),
                      const_spec(es_e), const_spec(es_o)],
            out_specs=(row_spec, row_spec),
            input_output_aliases={0: 0, 1: 1},   # in-place additive update
            compiler_params=_compiler_params(2 * wb
                                             + 8 * tb * max(hp, hidp) * 4),
            cost_estimate=pl.CostEstimate(flops=flops, transcendentals=0,
                                          bytes_accessed=bytes_acc),
        )(e, o,
          a.w1, a.b1, a.w2, a.b2, a.w3, a.b3,
          b.w1, b.b1, b.w2, b.b2, b.w3, b.b3,
          es_e, es_o)

        # Strip padding and re-interleave once back to the (B, W) layout.
        y = jnp.stack((e_out[:B, :half], o_out[:B, :half]), axis=2).reshape(B, W)
        return y, log_det

    def __call__(self, x):
        return self._fwd(x)


# ---------------------------------------------------------------------------
# Pure-JAX reference (correctness check only; uses the raw unpadded weights)
# ---------------------------------------------------------------------------
def _reference_step(flow, x):
    if flow.final:
        return x * jnp.exp(flow.scale), jnp.sum(flow.scale)
    B, W = x.shape
    xr = x.reshape(B, W // 2, 2)
    if flow.mask:
        on, off = xr[:, :, 0], xr[:, :, 1]
    else:
        off, on = xr[:, :, 0], xr[:, :, 1]
    h = jnp.maximum(off @ flow.w1_raw, 0.0)      # biases are zero
    h = jnp.maximum(h @ flow.w2_raw, 0.0)
    on = on + h @ flow.w3_raw
    if flow.mask:
        out = jnp.stack((on, off), axis=2)
    else:
        out = jnp.stack((off, on), axis=2)
    return out.reshape(B, W), 0


# ---------------------------------------------------------------------------
if __name__ == "__main__":
    key = jax.random.PRNGKey(0)
    kx, kp1, kp2 = jax.random.split(key, 3)

    B, dim = 2, 8
    x = jax.random.normal(kx, (B, dim), jnp.float32)

    # Stack: coupling(mask=True) -> coupling(mask=False) -> final scaling.
    # Demo keeps f32 weights so the reference check is exact; pass
    # param_dtype=jnp.bfloat16 for the high-throughput v6e/v7x configuration.
    flow1 = NiceFlowPallas(dim, mask=True, final=False, key=kp1)
    flow2 = NiceFlowPallas(dim, mask=False, final=False, key=kp2)
    flow3 = NiceFlowPallas(dim, mask=None, final=True)

    # Fused single-kernel path (recommended).
    stack = NiceFlowStackPallas(flow1, flow2, flow3)
    y_fused, logdet_fused = stack(x)
    y_fused = jax.block_until_ready(y_fused)
    logdet_fused = jax.block_until_ready(logdet_fused)

    # Per-step Pallas path (module-level semantics, one step per call).
    y_step, _ = flow1(x)
    y_step, _ = flow2(y_step)
    y_step, logdet_step = flow3(y_step)
    y_step = jax.block_until_ready(y_step)

    # Pure-JAX reference.
    yr, _ = _reference_step(flow1, x)
    yr, _ = _reference_step(flow2, yr)
    yr, logdet_r = _reference_step(flow3, yr)

    assert jnp.allclose(y_fused, yr, atol=1e-5, rtol=1e-5), "fused output mismatch"
    assert jnp.allclose(logdet_fused, logdet_r, atol=1e-6), "fused log_det mismatch"
    assert jnp.allclose(y_step, yr, atol=1e-5, rtol=1e-5), "per-step output mismatch"
    assert jnp.allclose(logdet_step, logdet_r, atol=1e-6), "per-step log_det mismatch"

    print("KERNEL_OK")
</pallas_src>

<mosaic_0001>
module attributes {stable_mosaic.version = 11 : i64} {
  func.func @_fused_flow_kernel(%arg0: i32, %arg1: memref<8x128xf32, #tpu.memory_space<vmem>>, %arg2: memref<8x128xf32, #tpu.memory_space<vmem>>, %arg3: memref<128x128xf32, #tpu.memory_space<vmem>>, %arg4: memref<1x128xf32, #tpu.memory_space<vmem>>, %arg5: memref<128x128xf32, #tpu.memory_space<vmem>>, %arg6: memref<1x128xf32, #tpu.memory_space<vmem>>, %arg7: memref<128x128xf32, #tpu.memory_space<vmem>>, %arg8: memref<1x128xf32, #tpu.memory_space<vmem>>, %arg9: memref<128x128xf32, #tpu.memory_space<vmem>>, %arg10: memref<1x128xf32, #tpu.memory_space<vmem>>, %arg11: memref<128x128xf32, #tpu.memory_space<vmem>>, %arg12: memref<1x128xf32, #tpu.memory_space<vmem>>, %arg13: memref<128x128xf32, #tpu.memory_space<vmem>>, %arg14: memref<1x128xf32, #tpu.memory_space<vmem>>, %arg15: memref<1x128xf32, #tpu.memory_space<vmem>>, %arg16: memref<1x128xf32, #tpu.memory_space<vmem>>, %arg17: memref<8x128xf32, #tpu.memory_space<vmem>>, %arg18: memref<8x128xf32, #tpu.memory_space<vmem>>) attributes {dimension_semantics = [#tpu.dimension_semantics<parallel>], iteration_bounds = array<i64: 1>, scalar_prefetch = 0 : i64, scratch_operands = 0 : i64, tpu.core_type = #tpu.core_type<tc>, window_params = [{transform_indices = @transform_0, window_bounds = array<i64: 8, 128>}, {transform_indices = @transform_1, window_bounds = array<i64: 8, 128>}, {pipeline_mode = #tpu.pipeline_mode<synchronous>, transform_indices = @transform_2, window_bounds = array<i64: 128, 128>}, {pipeline_mode = #tpu.pipeline_mode<synchronous>, transform_indices = @transform_3, window_bounds = array<i64: 1, 128>}, {pipeline_mode = #tpu.pipeline_mode<synchronous>, transform_indices = @transform_4, window_bounds = array<i64: 128, 128>}, {pipeline_mode = #tpu.pipeline_mode<synchronous>, transform_indices = @transform_5, window_bounds = array<i64: 1, 128>}, {pipeline_mode = #tpu.pipeline_mode<synchronous>, transform_indices = @transform_6, window_bounds = array<i64: 128, 128>}, {pipeline_mode = #tpu.pipeline_mode<synchronous>, transform_indices = @transform_7, window_bounds = array<i64: 1, 128>}, {pipeline_mode = #tpu.pipeline_mode<synchronous>, transform_indices = @transform_8, window_bounds = array<i64: 128, 128>}, {pipeline_mode = #tpu.pipeline_mode<synchronous>, transform_indices = @transform_9, window_bounds = array<i64: 1, 128>}, {pipeline_mode = #tpu.pipeline_mode<synchronous>, transform_indices = @transform_10, window_bounds = array<i64: 128, 128>}, {pipeline_mode = #tpu.pipeline_mode<synchronous>, transform_indices = @transform_11, window_bounds = array<i64: 1, 128>}, {pipeline_mode = #tpu.pipeline_mode<synchronous>, transform_indices = @transform_12, window_bounds = array<i64: 128, 128>}, {pipeline_mode = #tpu.pipeline_mode<synchronous>, transform_indices = @transform_13, window_bounds = array<i64: 1, 128>}, {pipeline_mode = #tpu.pipeline_mode<synchronous>, transform_indices = @transform_14, window_bounds = array<i64: 1, 128>}, {pipeline_mode = #tpu.pipeline_mode<synchronous>, transform_indices = @transform_15, window_bounds = array<i64: 1, 128>}, {transform_indices = @transform_16, window_bounds = array<i64: 8, 128>}, {transform_indices = @transform_17, window_bounds = array<i64: 8, 128>}]} {
    %c0 = arith.constant 0 : index
    %c0_0 = arith.constant 0 : index
    %0 = vector.load %arg1[%c0, %c0_0] : memref<8x128xf32, #tpu.memory_space<vmem>>, vector<8x128xf32>
    %c0_1 = arith.constant 0 : index
    %c0_2 = arith.constant 0 : index
    %1 = vector.load %arg2[%c0_1, %c0_2] : memref<8x128xf32, #tpu.memory_space<vmem>>, vector<8x128xf32>
    %c0_3 = arith.constant 0 : index
    %c0_4 = arith.constant 0 : index
    %2 = vector.load %arg3[%c0_3, %c0_4] : memref<128x128xf32, #tpu.memory_space<vmem>>, vector<128x128xf32>
    %cst = arith.constant dense<0.000000e+00> : vector<8x128xf32>
    %3 = tpu.matmul %1, %2, %cst {dimension_numbers = #tpu.dot_dimension_numbers<[1], [0], [0], [1], [0, 0, 1, 1], [], []>} : vector<8x128xf32>, vector<128x128xf32>, vector<8x128xf32> -> vector<8x128xf32>
    %c0_5 = arith.constant 0 : index
    %c0_6 = arith.constant 0 : index
    %4 = vector.load %arg4[%c0_5, %c0_6] : memref<1x128xf32, #tpu.memory_space<vmem>>, vector<1x128xf32>
    %5 = vector.broadcast %4 : vector<1x128xf32> to vector<8x128xf32>
    %6 = arith.addf %3, %5 : vector<8x128xf32>
    %cst_7 = arith.constant 0.000000e+00 : f32
    %7 = vector.broadcast %cst_7 : f32 to vector<8x128xf32>
    %8 = arith.maximumf %6, %7 : vector<8x128xf32>
    %c0_8 = arith.constant 0 : index
    %c0_9 = arith.constant 0 : index
    %9 = vector.load %arg5[%c0_8, %c0_9] : memref<128x128xf32, #tpu.memory_space<vmem>>, vector<128x128xf32>
    %cst_10 = arith.constant dense<0.000000e+00> : vector<8x128xf32>
    %10 = tpu.matmul %8, %9, %cst_10 {dimension_numbers = #tpu.dot_dimension_numbers<[1], [0], [0], [1], [0, 0, 1, 1], [], []>} : vector<8x128xf32>, vector<128x128xf32>, vector<8x128xf32> -> vector<8x128xf32>
    %c0_11 = arith.constant 0 : index
    %c0_12 = arith.constant 0 : index
    %11 = vector.load %arg6[%c0_11, %c0_12] : memref<1x128xf32, #tpu.memory_space<vmem>>, vector<1x128xf32>
    %12 = vector.broadcast %11 : vector<1x128xf32> to vector<8x128xf32>
    %13 = arith.addf %10, %12 : vector<8x128xf32>
    %cst_13 = arith.constant 0.000000e+00 : f32
    %14 = vector.broadcast %cst_13 : f32 to vector<8x128xf32>
    %15 = arith.maximumf %13, %14 : vector<8x128xf32>
    %c0_14 = arith.constant 0 : index
    %c0_15 = arith.constant 0 : index
    %16 = vector.load %arg7[%c0_14, %c0_15] : memref<128x128xf32, #tpu.memory_space<vmem>>, vector<128x128xf32>
    %cst_16 = arith.constant dense<0.000000e+00> : vector<8x128xf32>
    %17 = tpu.matmul %15, %16, %cst_16 {dimension_numbers = #tpu.dot_dimension_numbers<[1], [0], [0], [1], [0, 0, 1, 1], [], []>} : vector<8x128xf32>, vector<128x128xf32>, vector<8x128xf32> -> vector<8x128xf32>
    %c0_17 = arith.constant 0 : index
    %c0_18 = arith.constant 0 : index
    %18 = vector.load %arg8[%c0_17, %c0_18] : memref<1x128xf32, #tpu.memory_space<vmem>>, vector<1x128xf32>
    %19 = vector.broadcast %18 : vector<1x128xf32> to vector<8x128xf32>
    %20 = arith.addf %17, %19 : vector<8x128xf32>
    %21 = arith.addf %0, %20 : vector<8x128xf32>
    %c0_19 = arith.constant 0 : index
    %c0_20 = arith.constant 0 : index
    %22 = vector.load %arg9[%c0_19, %c0_20] : memref<128x128xf32, #tpu.memory_space<vmem>>, vector<128x128xf32>
    %cst_21 = arith.constant dense<0.000000e+00> : vector<8x128xf32>
    %23 = tpu.matmul %21, %22, %cst_21 {dimension_numbers = #tpu.dot_dimension_numbers<[1], [0], [0], [1], [0, 0, 1, 1], [], []>} : vector<8x128xf32>, vector<128x128xf32>, vector<8x128xf32> -> vector<8x128xf32>
    %c0_22 = arith.constant 0 : index
    %c0_23 = arith.constant 0 : index
    %24 = vector.load %arg10[%c0_22, %c0_23] : memref<1x128xf32, #tpu.memory_space<vmem>>, vector<1x128xf32>
    %25 = vector.broadcast %24 : vector<1x128xf32> to vector<8x128xf32>
    %26 = arith.addf %23, %25 : vector<8x128xf32>
    %cst_24 = arith.constant 0.000000e+00 : f32
    %27 = vector.broadcast %cst_24 : f32 to vector<8x128xf32>
    %28 = arith.maximumf %26, %27 : vector<8x128xf32>
    %c0_25 = arith.constant 0 : index
    %c0_26 = arith.constant 0 : index
    %29 = vector.load %arg11[%c0_25, %c0_26] : memref<128x128xf32, #tpu.memory_space<vmem>>, vector<128x128xf32>
    %cst_27 = arith.constant dense<0.000000e+00> : vector<8x128xf32>
    %30 = tpu.matmul %28, %29, %cst_27 {dimension_numbers = #tpu.dot_dimension_numbers<[1], [0], [0], [1], [0, 0, 1, 1], [], []>} : vector<8x128xf32>, vector<128x128xf32>, vector<8x128xf32> -> vector<8x128xf32>
    %c0_28 = arith.constant 0 : index
    %c0_29 = arith.constant 0 : index
    %31 = vector.load %arg12[%c0_28, %c0_29] : memref<1x128xf32, #tpu.memory_space<vmem>>, vector<1x128xf32>
    %32 = vector.broadcast %31 : vector<1x128xf32> to vector<8x128xf32>
    %33 = arith.addf %30, %32 : vector<8x128xf32>
    %cst_30 = arith.constant 0.000000e+00 : f32
    %34 = vector.broadcast %cst_30 : f32 to vector<8x128xf32>
    %35 = arith.maximumf %33, %34 : vector<8x128xf32>
    %c0_31 = arith.constant 0 : index
    %c0_32 = arith.constant 0 : index
    %36 = vector.load %arg13[%c0_31, %c0_32] : memref<128x128xf32, #tpu.memory_space<vmem>>, vector<128x128xf32>
    %cst_33 = arith.constant dense<0.000000e+00> : vector<8x128xf32>
    %37 = tpu.matmul %35, %36, %cst_33 {dimension_numbers = #tpu.dot_dimension_numbers<[1], [0], [0], [1], [0, 0, 1, 1], [], []>} : vector<8x128xf32>, vector<128x128xf32>, vector<8x128xf32> -> vector<8x128xf32>
    %c0_34 = arith.constant 0 : index
    %c0_35 = arith.constant 0 : index
    %38 = vector.load %arg14[%c0_34, %c0_35] : memref<1x128xf32, #tpu.memory_space<vmem>>, vector<1x128xf32>
    %39 = vector.broadcast %38 : vector<1x128xf32> to vector<8x128xf32>
    %40 = arith.addf %37, %39 : vector<8x128xf32>
    %41 = arith.addf %1, %40 : vector<8x128xf32>
    %c0_36 = arith.constant 0 : index
    %c0_37 = arith.constant 0 : index
    %42 = vector.load %arg15[%c0_36, %c0_37] : memref<1x128xf32, #tpu.memory_space<vmem>>, vector<1x128xf32>
    %43 = vector.broadcast %42 : vector<1x128xf32> to vector<8x128xf32>
    %44 = arith.mulf %21, %43 : vector<8x128xf32>
    %c0_38 = arith.constant 0 : index
    %c0_39 = arith.constant 0 : index
    %45 = vector.load %arg17[%c0_38, %c0_39] : memref<8x128xf32, #tpu.memory_space<vmem>>, vector<8x128xf32>
    tpu.vector_store %arg17[%c0_38, %c0_39], %44 {strides = array<i32>} : memref<8x128xf32, #tpu.memory_space<vmem>>, vector<8x128xf32>,
    %c0_40 = arith.constant 0 : index
    %c0_41 = arith.constant 0 : index
    %46 = vector.load %arg16[%c0_40, %c0_41] : memref<1x128xf32, #tpu.memory_space<vmem>>, vector<1x128xf32>
    %47 = vector.broadcast %46 : vector<1x128xf32> to vector<8x128xf32>
    %48 = arith.mulf %41, %47 : vector<8x128xf32>
    %c0_42 = arith.constant 0 : index
    %c0_43 = arith.constant 0 : index
    %49 = vector.load %arg18[%c0_42, %c0_43] : memref<8x128xf32, #tpu.memory_space<vmem>>, vector<8x128xf32>
    tpu.vector_store %arg18[%c0_42, %c0_43], %48 {strides = array<i32>} : memref<8x128xf32, #tpu.memory_space<vmem>>, vector<8x128xf32>,
    return
  }
  func.func @transform_0(%arg0: i32) -> (i32, i32) {
    %c0_i32 = arith.constant 0 : i32
    %c0_i32_0 = arith.constant 0 : i32
    return %arg0, %c0_i32 : i32, i32
  }
  func.func @transform_1(%arg0: i32) -> (i32, i32) {
    %c0_i32 = arith.constant 0 : i32
    %c0_i32_0 = arith.constant 0 : i32
    return %arg0, %c0_i32 : i32, i32
  }
  func.func @transform_2(%arg0: i32) -> (i32, i32) {
    %c0_i32 = arith.constant 0 : i32
    %c0_i32_0 = arith.constant 0 : i32
    %c0_i32_1 = arith.constant 0 : i32
    return %c0_i32, %c0_i32_0 : i32, i32
  }
  func.func @transform_3(%arg0: i32) -> (i32, i32) {
    %c0_i32 = arith.constant 0 : i32
    %c0_i32_0 = arith.constant 0 : i32
    %c0_i32_1 = arith.constant 0 : i32
    return %c0_i32, %c0_i32_0 : i32, i32
  }
  func.func @transform_4(%arg0: i32) -> (i32, i32) {
    %c0_i32 = arith.constant 0 : i32
    %c0_i32_0 = arith.constant 0 : i32
    %c0_i32_1 = arith.constant 0 : i32
    return %c0_i32, %c0_i32_0 : i32, i32
  }
  func.func @transform_5(%arg0: i32) -> (i32, i32) {
    %c0_i32 = arith.constant 0 : i32
    %c0_i32_0 = arith.constant 0 : i32
    %c0_i32_1 = arith.constant 0 : i32
    return %c0_i32, %c0_i32_0 : i32, i32
  }
  func.func @transform_6(%arg0: i32) -> (i32, i32) {
    %c0_i32 = arith.constant 0 : i32
    %c0_i32_0 = arith.constant 0 : i32
    %c0_i32_1 = arith.constant 0 : i32
    return %c0_i32, %c0_i32_0 : i32, i32
  }
  func.func @transform_7(%arg0: i32) -> (i32, i32) {
    %c0_i32 = arith.constant 0 : i32
    %c0_i32_0 = arith.constant 0 : i32
    %c0_i32_1 = arith.constant 0 : i32
    return %c0_i32, %c0_i32_0 : i32, i32
  }
  func.func @transform_8(%arg0: i32) -> (i32, i32) {
    %c0_i32 = arith.constant 0 : i32
    %c0_i32_0 = arith.constant 0 : i32
    %c0_i32_1 = arith.constant 0 : i32
    return %c0_i32, %c0_i32_0 : i32, i32
  }
  func.func @transform_9(%arg0: i32) -> (i32, i32) {
    %c0_i32 = arith.constant 0 : i32
    %c0_i32_0 = arith.constant 0 : i32
    %c0_i32_1 = arith.constant 0 : i32
    return %c0_i32, %c0_i32_0 : i32, i32
  }
  func.func @transform_10(%arg0: i32) -> (i32, i32) {
    %c0_i32 = arith.constant 0 : i32
    %c0_i32_0 = arith.constant 0 : i32
    %c0_i32_1 = arith.constant 0 : i32
    return %c0_i32, %c0_i32_0 : i32, i32
  }
  func.func @transform_11(%arg0: i32) -> (i32, i32) {
    %c0_i32 = arith.constant 0 : i32
    %c0_i32_0 = arith.constant 0 : i32
    %c0_i32_1 = arith.constant 0 : i32
    return %c0_i32, %c0_i32_0 : i32, i32
  }
  func.func @transform_12(%arg0: i32) -> (i32, i32) {
    %c0_i32 = arith.constant 0 : i32
    %c0_i32_0 = arith.constant 0 : i32
    %c0_i32_1 = arith.constant 0 : i32
    return %c0_i32, %c0_i32_0 : i32, i32
  }
  func.func @transform_13(%arg0: i32) -> (i32, i32) {
    %c0_i32 = arith.constant 0 : i32
    %c0_i32_0 = arith.constant 0 : i32
    %c0_i32_1 = arith.constant 0 : i32
    return %c0_i32, %c0_i32_0 : i32, i32
  }
  func.func @transform_14(%arg0: i32) -> (i32, i32) {
    %c0_i32 = arith.constant 0 : i32
    %c0_i32_0 = arith.constant 0 : i32
    %c0_i32_1 = arith.constant 0 : i32
    return %c0_i32, %c0_i32_0 : i32, i32
  }
  func.func @transform_15(%arg0: i32) -> (i32, i32) {
    %c0_i32 = arith.constant 0 : i32
    %c0_i32_0 = arith.constant 0 : i32
    %c0_i32_1 = arith.constant 0 : i32
    return %c0_i32, %c0_i32_0 : i32, i32
  }
  func.func @transform_16(%arg0: i32) -> (i32, i32) {
    %c0_i32 = arith.constant 0 : i32
    %c0_i32_0 = arith.constant 0 : i32
    return %arg0, %c0_i32 : i32, i32
  }
  func.func @transform_17(%arg0: i32) -> (i32, i32) {
    %c0_i32 = arith.constant 0 : i32
    %c0_i32_0 = arith.constant 0 : i32
    return %arg0, %c0_i32 : i32, i32
  }
}

</mosaic_0001>

<llo_original>
// kernel: _forward.1
$region0: #{_forward.1}
  #allocation0 [shape = 'u32[]', space=smem, size = 0x4, offset = 0x4, fixed_abs, tag = 'smem constant byte address 0x4 - core index']
  #allocation1 [shape = 'u32[144,128]{1,0:T(1,128)}', space=vmem, size = 0x12000, scoped, tag = 'internal scratch']
  %s0 = inlined_call_operand.vmem [shape: f32[8,128], index: 0, kind: input, shape index: {}, may-alias: {0,16}]
  %s1 = inlined_call_operand.vmem [shape: f32[8,128], index: 1, kind: input, shape index: {}, may-alias: {1,17}]
  %s2 = inlined_call_operand.hbm [shape: f32[128,128], index: 2, kind: input, shape index: {}]
  %s3 = inlined_call_operand.vmem [shape: f32[1,128], index: 3, kind: input, shape index: {}, may-alias: {3,5,7,9,11,13}]
  %s4 = inlined_call_operand.hbm [shape: f32[128,128], index: 4, kind: input, shape index: {}]
  %s5 = inlined_call_operand.vmem [shape: f32[1,128], index: 5, kind: input, shape index: {}, may-alias: {3,5,7,9,11,13}]
  %s6 = inlined_call_operand.hbm [shape: f32[128,128], index: 6, kind: input, shape index: {}]
  %s7 = inlined_call_operand.vmem [shape: f32[1,128], index: 7, kind: input, shape index: {}, may-alias: {3,5,7,9,11,13}]
  %s8 = inlined_call_operand.hbm [shape: f32[128,128], index: 8, kind: input, shape index: {}]
  %s9 = inlined_call_operand.vmem [shape: f32[1,128], index: 9, kind: input, shape index: {}, may-alias: {3,5,7,9,11,13}]
  %s10 = inlined_call_operand.hbm [shape: f32[128,128], index: 10, kind: input, shape index: {}]
  %s11 = inlined_call_operand.vmem [shape: f32[1,128], index: 11, kind: input, shape index: {}, may-alias: {3,5,7,9,11,13}]
  %s12 = inlined_call_operand.hbm [shape: f32[128,128], index: 12, kind: input, shape index: {}]
  %s13 = inlined_call_operand.vmem [shape: f32[1,128], index: 13, kind: input, shape index: {}, may-alias: {3,5,7,9,11,13}]
  %s14 = inlined_call_operand.vmem [shape: f32[1,128], index: 14, kind: input, shape index: {}, may-alias: {14,15}]
  %s15 = inlined_call_operand.vmem [shape: f32[1,128], index: 15, kind: input, shape index: {}, may-alias: {14,15}]
  %s16 = inlined_call_operand.vmem [shape: f32[8,128], index: 16, kind: output, shape index: {0}, may-alias: {0,16}]
  %s17 = inlined_call_operand.vmem [shape: f32[8,128], index: 17, kind: output, shape index: {1}, may-alias: {1,17}]
  %18 = xla_tuple %s16, %s17
  %s19 = sld [smem:[#allocation0]]
  $region106: #{_forward.1} parent=0
    _
  %s21 = ssub.s32 1, %s19
  %s22 = scalar_select 0, %s21, %s19
  $region1: #{_forward.1} parent=0
    #allocation2 [shape = 'u8[65536]{0}', space=vmem, size = 0x10000, scoped, tag = 'input window, operand 2, single buffered']
    #allocation3 [shape = 's32[1]{0}', space=sflag, size = 0x4, scoped, tag = 'scoped memory for _forward.1']
    #allocation4 [shape = 'u8[65536]{0}', space=vmem, size = 0x10000, scoped, tag = 'input window, operand 4, single buffered']
    #allocation5 [shape = 's32[1]{0}', space=sflag, size = 0x4, scoped, tag = 'scoped memory for _forward.1']
    #allocation6 [shape = 'u8[65536]{0}', space=vmem, size = 0x10000, scoped, tag = 'input window, operand 6, single buffered']
    #allocation7 [shape = 'u8[65536]{0}', space=vmem, size = 0x10000, scoped, tag = 'input window, operand 8, single buffered']
    #allocation8 [shape = 's32[1]{0}', space=sflag, size = 0x4, scoped, tag = 'scoped memory for _forward.1']
    #allocation9 [shape = 'u8[65536]{0}', space=vmem, size = 0x10000, scoped, tag = 'input window, operand 10, single buffered']
    #allocation10 [shape = 'u8[65536]{0}', space=vmem, size = 0x10000, scoped, tag = 'input window, operand 12, single buffered']
    #allocation11 [shape = 's32[1]{0}', space=sflag, size = 0x4, scoped, tag = 'scoped memory for _forward.1']
    %23 = vsyncpa [#allocation3], 0
    %24 = vsyncpa [#allocation5], 0
    %25 = vsyncpa [#allocation8], 0
    %26 = vsyncpa [#allocation11], 0
    // Predicated region
    $region2: #{_forward.1} parent=1 // pred_check
      _
    $region3: #{_forward.1} parent=1 // pred_check_branch
      %28 = sbr.rel (0) target = $region5
    $region4: #{_forward.1} parent=1 // pred_region
      _
    $region5: #{_forward.1} parent=1 // pred_fallthru
      _
    // Predicated region
    $region6: #{_forward.1} parent=1 // pred_check
      _
    $region7: #{_forward.1} parent=1 // pred_check_branch
      %30 = sbr.rel (0) target = $region9
    $region8: #{_forward.1} parent=1 // pred_region
      _
    $region9: #{_forward.1} parent=1 // pred_fallthru
      _
    // Predicated region
    $region10: #{_forward.1} parent=1 // pred_check
      _
    $region11: #{_forward.1} parent=1 // pred_check_branch
      %32 = sbr.rel (0) target = $region13
    $region12: #{_forward.1} parent=1 // pred_region
      %s34 = ssub.s32 2048, 2048
      %35 = vsyncadd [#allocation3], %s34
      %s36 = sshll.u32 [#allocation2], 4
      %s37 = int_to_ptr.vmem [resolvable:$true] %s36
      %42 = dma.hbm_to_vmem [thread:$0]  %s2, 2048, %s37, [#allocation3], 128, 128, 8
    $region13: #{_forward.1} parent=1 // pred_fallthru
      _
    // Predicated region
    $region14: #{_forward.1} parent=1 // pred_check
      _
    $region15: #{_forward.1} parent=1 // pred_check_branch
      %44 = sbr.rel (0) target = $region17
    $region16: #{_forward.1} parent=1 // pred_region
      _
    $region17: #{_forward.1} parent=1 // pred_fallthru
      _
    // Predicated region
    $region18: #{_forward.1} parent=1 // pred_check
      _
    $region19: #{_forward.1} parent=1 // pred_check_branch
      %46 = sbr.rel (0) target = $region21
    $region20: #{_forward.1} parent=1 // pred_region
      %s48 = ssub.s32 2048, 2048
      %49 = vsyncadd [#allocation5], %s48
      %s50 = sshll.u32 [#allocation4], 4
      %s51 = int_to_ptr.vmem [resolvable:$true] %s50
      %56 = dma.hbm_to_vmem [thread:$0]  %s4, 2048, %s51, [#allocation5], 128, 128, 8
    $region21: #{_forward.1} parent=1 // pred_fallthru
      _
    // Predicated region
    $region22: #{_forward.1} parent=1 // pred_check
      _
    $region23: #{_forward.1} parent=1 // pred_check_branch
      %58 = sbr.rel (0) target = $region25
    $region24: #{_forward.1} parent=1 // pred_region
      _
    $region25: #{_forward.1} parent=1 // pred_fallthru
      _
    // Predicated region
    $region26: #{_forward.1} parent=1 // pred_check
      _
    $region27: #{_forward.1} parent=1 // pred_check_branch
      %60 = sbr.rel (0) target = $region29
    $region28: #{_forward.1} parent=1 // pred_region
      %s62 = ssub.s32 2048, 2048
      %63 = vsyncadd [#allocation5], %s62
      %s64 = sshll.u32 [#allocation6], 4
      %s65 = int_to_ptr.vmem [resolvable:$true] %s64
      %70 = dma.hbm_to_vmem [thread:$0]  %s6, 2048, %s65, [#allocation5], 128, 128, 8
    $region29: #{_forward.1} parent=1 // pred_fallthru
      _
    // Predicated region
    $region30: #{_forward.1} parent=1 // pred_check
      _
    $region31: #{_forward.1} parent=1 // pred_check_branch
      %72 = sbr.rel (0) target = $region33
    $region32: #{_forward.1} parent=1 // pred_region
      _
    $region33: #{_forward.1} parent=1 // pred_fallthru
      _
    // Predicated region
    $region34: #{_forward.1} parent=1 // pred_check
      _
    $region35: #{_forward.1} parent=1 // pred_check_branch
      %74 = sbr.rel (0) target = $region37
    $region36: #{_forward.1} parent=1 // pred_region
      %s76 = ssub.s32 2048, 2048
      %77 = vsyncadd [#allocation8], %s76
      %s78 = sshll.u32 [#allocation7], 4
      %s79 = int_to_ptr.vmem [resolvable:$true] %s78
      %84 = dma.hbm_to_vmem [thread:$0]  %s8, 2048, %s79, [#allocation8], 128, 128, 8
    $region37: #{_forward.1} parent=1 // pred_fallthru
      _
    // Predicated region
    $region38: #{_forward.1} parent=1 // pred_check
      _
    $region39: #{_forward.1} parent=1 // pred_check_branch
      %86 = sbr.rel (0) target = $region41
    $region40: #{_forward.1} parent=1 // pred_region
      _
    $region41: #{_forward.1} parent=1 // pred_fallthru
      _
    // Predicated region
    $region42: #{_forward.1} parent=1 // pred_check
      _
    $region43: #{_forward.1} parent=1 // pred_check_branch
      %88 = sbr.rel (0) target = $region45
    $region44: #{_forward.1} parent=1 // pred_region
      %s90 = ssub.s32 2048, 2048
      %91 = vsyncadd [#allocation8], %s90
      %s92 = sshll.u32 [#allocation9], 4
      %s93 = int_to_ptr.vmem [resolvable:$true] %s92
      %98 = dma.hbm_to_vmem [thread:$0]  %s10, 2048, %s93, [#allocation8], 128, 128, 8
    $region45: #{_forward.1} parent=1 // pred_fallthru
      _
    // Predicated region
    $region46: #{_forward.1} parent=1 // pred_check
      _
    $region47: #{_forward.1} parent=1 // pred_check_branch
      %100 = sbr.rel (0) target = $region49
    $region48: #{_forward.1} parent=1 // pred_region
      _
    $region49: #{_forward.1} parent=1 // pred_fallthru
      _
    // Predicated region
    $region50: #{_forward.1} parent=1 // pred_check
      _
    $region51: #{_forward.1} parent=1 // pred_check_branch
      %102 = sbr.rel (0) target = $region53
    $region52: #{_forward.1} parent=1 // pred_region
      %s104 = ssub.s32 2048, 2048
      %105 = vsyncadd [#allocation11], %s104
      %s106 = sshll.u32 [#allocation10], 4
      %s107 = int_to_ptr.vmem [resolvable:$true] %s106
      %112 = dma.hbm_to_vmem [thread:$0]  %s12, 2048, %s107, [#allocation11], 128, 128, 8
    $region53: #{_forward.1} parent=1 // pred_fallthru
      _
    // Predicated region
    $region54: #{_forward.1} parent=1 // pred_check
      _
    $region55: #{_forward.1} parent=1 // pred_check_branch
      %114 = sbr.rel (0) target = $region57
    $region56: #{_forward.1} parent=1 // pred_region
      _
    $region57: #{_forward.1} parent=1 // pred_fallthru
      _
    // Predicated region
    $region58: #{_forward.1} parent=1 // pred_check
      _
    $region59: #{_forward.1} parent=1 // pred_check_branch
      %116 = sbr.rel (0) target = $region61
    $region60: #{_forward.1} parent=1 // pred_region
      _
    $region61: #{_forward.1} parent=1 // pred_fallthru
      _
    // Predicated region
    $region62: #{_forward.1} parent=1 // pred_check
      _
    $region63: #{_forward.1} parent=1 // pred_check_branch
      %118 = sbr.rel (0) target = $region65
    $region64: #{_forward.1} parent=1 // pred_region
      _
    $region65: #{_forward.1} parent=1 // pred_fallthru
      _
    // Predicated region
    $region66: #{_forward.1} parent=1 // pred_check
      _
    $region67: #{_forward.1} parent=1 // pred_check_branch
      %120 = sbr.rel (0) target = $region69
    $region68: #{_forward.1} parent=1 // pred_region
      %121 = dma.done [#allocation3], 2048
    $region69: #{_forward.1} parent=1 // pred_fallthru
      _
    // Predicated region
    $region70: #{_forward.1} parent=1 // pred_check
      _
    $region71: #{_forward.1} parent=1 // pred_check_branch
      %123 = sbr.rel (0) target = $region73
    $region72: #{_forward.1} parent=1 // pred_region
      %124 = dma.done [#allocation5], 2048
    $region73: #{_forward.1} parent=1 // pred_fallthru
      _
    // Predicated region
    $region74: #{_forward.1} parent=1 // pred_check
      _
    $region75: #{_forward.1} parent=1 // pred_check_branch
      %126 = sbr.rel (0) target = $region77
    $region76: #{_forward.1} parent=1 // pred_region
      %127 = dma.done [#allocation5], 2048
    $region77: #{_forward.1} parent=1 // pred_fallthru
      _
    // Predicated region
    $region78: #{_forward.1} parent=1 // pred_check
      _
    $region79: #{_forward.1} parent=1 // pred_check_branch
      %129 = sbr.rel (0) target = $region81
    $region80: #{_forward.1} parent=1 // pred_region
      %130 = dma.done [#allocation8], 2048
    $region81: #{_forward.1} parent=1 // pred_fallthru
      _
    // Predicated region
    $region82: #{_forward.1} parent=1 // pred_check
      _
    $region83: #{_forward.1} parent=1 // pred_check_branch
      %132 = sbr.rel (0) target = $region85
    $region84: #{_forward.1} parent=1 // pred_region
      %133 = dma.done [#allocation8], 2048
    $region85: #{_forward.1} parent=1 // pred_fallthru
      _
    // Predicated region
    $region86: #{_forward.1} parent=1 // pred_check
      _
    $region87: #{_forward.1} parent=1 // pred_check_branch
      %135 = sbr.rel (0) target = $region89
    $region88: #{_forward.1} parent=1 // pred_region
      %136 = dma.done [#allocation11], 2048
    $region89: #{_forward.1} parent=1 // pred_fallthru
      _
    %v137 = vld [vmem:[%s0] sm:$0xff]
    %v138 = vld [vmem:[%s1] sm:$0xff]
    %v139 = vld [vmem:[#allocation2] sm:$0xff]
    %v140 = vld [vmem:[#allocation2 + $0x8] sm:$0xff]
    %v141 = vld [vmem:[#allocation2 + $0x10] sm:$0xff]
    %v142 = vld [vmem:[#allocation2 + $0x18] sm:$0xff]
    %v143 = vld [vmem:[#allocation2 + $0x20] sm:$0xff]
    %v144 = vld [vmem:[#allocation2 + $0x28] sm:$0xff]
    %v145 = vld [vmem:[#allocation2 + $0x30] sm:$0xff]
    %v146 = vld [vmem:[#allocation2 + $0x38] sm:$0xff]
    %v147 = vld [vmem:[#allocation2 + $0x40] sm:$0xff]
    %v148 = vld [vmem:[#allocation2 + $0x48] sm:$0xff]
    %v149 = vld [vmem:[#allocation2 + $0x50] sm:$0xff]
    %v150 = vld [vmem:[#allocation2 + $0x58] sm:$0xff]
    %v151 = vld [vmem:[#allocation2 + $0x60] sm:$0xff]
    %v152 = vld [vmem:[#allocation2 + $0x68] sm:$0xff]
    %v153 = vld [vmem:[#allocation2 + $0x70] sm:$0xff]
    %v154 = vld [vmem:[#allocation2 + $0x78] sm:$0xff]
    %v155 = vld [vmem:[%s3] sm:$0x1]
    %v157 = vlaneseq
    %v158 = vshrl.u32 %v157, 7
    %v159 = vsub.s32 0, %v158
    %v160 = vrot.slane %v155, %v159
    %162 = vmatprep.subr.mxu0 0.0
    %163 = vmatpush1.msra.mxu0 %v139
    %164 = vmatprep.subr.mxu0 0.0
    %165 = vmatpush1.msra.mxu0 %v140
    %166 = vmatprep.subr.mxu0 0.0
    %167 = vmatpush1.msra.mxu0 %v141
    %168 = vmatprep.subr.mxu0 0.0
    %169 = vmatpush1.msra.mxu0 %v142
    %170 = vmatprep.subr.mxu0 0.0
    %171 = vmatpush1.msra.mxu0 %v143
    %172 = vmatprep.subr.mxu0 0.0
    %173 = vmatpush1.msra.mxu0 %v144
    %174 = vmatprep.subr.mxu0 0.0
    %175 = vmatpush1.msra.mxu0 %v145
    %176 = vmatprep.subr.mxu0 0.0
    %177 = vmatpush1.msra.mxu0 %v146
    %178 = vmatprep.subr.mxu0 0.0
    %179 = vmatpush1.msra.mxu0 %v147
    %180 = vmatprep.subr.mxu0 0.0
    %181 = vmatpush1.msra.mxu0 %v148
    %182 = vmatprep.subr.mxu0 0.0
    %183 = vmatpush1.msra.mxu0 %v149
    %184 = vmatprep.subr.mxu0 0.0
    %185 = vmatpush1.msra.mxu0 %v150
    %186 = vmatprep.subr.mxu0 0.0
    %187 = vmatpush1.msra.mxu0 %v151
    %188 = vmatprep.subr.mxu0 0.0
    %189 = vmatpush1.msra.mxu0 %v152
    %190 = vmatprep.subr.mxu0 0.0
    %191 = vmatpush1.msra.mxu0 %v153
    %192 = vmatprep.subr.mxu0 0.0
    %193 = vmatpush1.msra.mxu0 %v154
    %194 = vmatprep.subr.mxu0 0.0
    %195 = vmatpush1.msra.mxu0 0.0
    %196 = vmatprep.subr.mxu0 0.0
    %197 = vmatpush1.msra.mxu0 0.0
    %198 = vmatprep.subr.mxu0 0.0
    %199 = vmatpush1.msra.mxu0 0.0
    %200 = vmatprep.subr.mxu0 0.0
    %201 = vmatpush1.msra.mxu0 0.0
    %202 = vmatprep.subr.mxu0 0.0
    %203 = vmatpush1.msra.mxu0 0.0
    %204 = vmatprep.subr.mxu0 0.0
    %205 = vmatpush1.msra.mxu0 0.0
    %206 = vmatprep.subr.mxu0 0.0
    %207 = vmatpush1.msra.mxu0 0.0
    %208 = vmatprep.subr.mxu0 0.0
    %209 = vmatpush1.msra.mxu0 0.0
    %210 = vmatprep.subr.mxu0 0.0
    %211 = vmatpush1.msra.mxu0 0.0
    %212 = vmatprep.subr.mxu0 0.0
    %213 = vmatpush1.msra.mxu0 0.0
    %214 = vmatprep.subr.mxu0 0.0
    %215 = vmatpush1.msra.mxu0 0.0
    %216 = vmatprep.subr.mxu0 0.0
    %217 = vmatpush1.msra.mxu0 0.0
    %218 = vmatprep.subr.mxu0 0.0
    %219 = vmatpush1.msra.mxu0 0.0
    %220 = vmatprep.subr.mxu0 0.0
    %221 = vmatpush1.msra.mxu0 0.0
    %222 = vmatprep.subr.mxu0 0.0
    %223 = vmatpush1.msra.mxu0 0.0
    %224 = vmatprep.subr.mxu0 0.0
    %225 = vmatpush1.msra.mxu0 0.0
    %226 = vmatprep.mubr.f32.mxu0 0.0
    %227 = vmatmul.mubr.f32.gmra.mrb[0].mxu0 %v138
    %v228 = vpop.f32.mrb[0].mxu0
    %v229 = vadd.f32 %v160, %v228
    %v230 = vpop.f32.mrb[0].mxu0
    %231 = vdwg.mxu0
    %v232 = vmax.f32 %v229, 0.0
    %v233 = vld [vmem:[#allocation4] sm:$0xff]
    %v234 = vld [vmem:[#allocation4 + $0x8] sm:$0xff]
    %v235 = vld [vmem:[#allocation4 + $0x10] sm:$0xff]
    %v236 = vld [vmem:[#allocation4 + $0x18] sm:$0xff]
    %v237 = vld [vmem:[#allocation4 + $0x20] sm:$0xff]
    %v238 = vld [vmem:[#allocation4 + $0x28] sm:$0xff]
    %v239 = vld [vmem:[#allocation4 + $0x30] sm:$0xff]
    %v240 = vld [vmem:[#allocation4 + $0x38] sm:$0xff]
    %v241 = vld [vmem:[#allocation4 + $0x40] sm:$0xff]
    %v242 = vld [vmem:[#allocation4 + $0x48] sm:$0xff]
    %v243 = vld [vmem:[#allocation4 + $0x50] sm:$0xff]
    %v244 = vld [vmem:[#allocation4 + $0x58] sm:$0xff]
    %v245 = vld [vmem:[#allocation4 + $0x60] sm:$0xff]
    %v246 = vld [vmem:[#allocation4 + $0x68] sm:$0xff]
    %v247 = vld [vmem:[#allocation4 + $0x70] sm:$0xff]
    %v248 = vld [vmem:[#allocation4 + $0x78] sm:$0xff]
    %v249 = vld [vmem:[%s5] sm:$0x1]
    %v251 = vlaneseq
    %v252 = vshrl.u32 %v251, 7
    %v253 = vsub.s32 0, %v252
    %v254 = vrot.slane %v249, %v253
    %256 = vmatprep.subr.mxu0 0.0
    %257 = vmatpush1.msra.mxu0 %v233
    %258 = vmatprep.subr.mxu0 0.0
    %259 = vmatpush1.msra.mxu0 %v234
    %260 = vmatprep.subr.mxu0 0.0
    %261 = vmatpush1.msra.mxu0 %v235
    %262 = vmatprep.subr.mxu0 0.0
    %263 = vmatpush1.msra.mxu0 %v236
    %264 = vmatprep.subr.mxu0 0.0
    %265 = vmatpush1.msra.mxu0 %v237
    %266 = vmatprep.subr.mxu0 0.0
    %267 = vmatpush1.msra.mxu0 %v238
    %268 = vmatprep.subr.mxu0 0.0
    %269 = vmatpush1.msra.mxu0 %v239
    %270 = vmatprep.subr.mxu0 0.0
    %271 = vmatpush1.msra.mxu0 %v240
    %272 = vmatprep.subr.mxu0 0.0
    %273 = vmatpush1.msra.mxu0 %v241
    %274 = vmatprep.subr.mxu0 0.0
    %275 = vmatpush1.msra.mxu0 %v242
    %276 = vmatprep.subr.mxu0 0.0
    %277 = vmatpush1.msra.mxu0 %v243
    %278 = vmatprep.subr.mxu0 0.0
    %279 = vmatpush1.msra.mxu0 %v244
    %280 = vmatprep.subr.mxu0 0.0
    %281 = vmatpush1.msra.mxu0 %v245
    %282 = vmatprep.subr.mxu0 0.0
    %283 = vmatpush1.msra.mxu0 %v246
    %284 = vmatprep.subr.mxu0 0.0
    %285 = vmatpush1.msra.mxu0 %v247
    %286 = vmatprep.subr.mxu0 0.0
    %287 = vmatpush1.msra.mxu0 %v248
    %288 = vmatprep.subr.mxu0 0.0
    %289 = vmatpush1.msra.mxu0 0.0
    %290 = vmatprep.subr.mxu0 0.0
    %291 = vmatpush1.msra.mxu0 0.0
    %292 = vmatprep.subr.mxu0 0.0
    %293 = vmatpush1.msra.mxu0 0.0
    %294 = vmatprep.subr.mxu0 0.0
    %295 = vmatpush1.msra.mxu0 0.0
    %296 = vmatprep.subr.mxu0 0.0
    %297 = vmatpush1.msra.mxu0 0.0
    %298 = vmatprep.subr.mxu0 0.0
    %299 = vmatpush1.msra.mxu0 0.0
    %300 = vmatprep.subr.mxu0 0.0
    %301 = vmatpush1.msra.mxu0 0.0
    %302 = vmatprep.subr.mxu0 0.0
    %303 = vmatpush1.msra.mxu0 0.0
    %304 = vmatprep.subr.mxu0 0.0
    %305 = vmatpush1.msra.mxu0 0.0
    %306 = vmatprep.subr.mxu0 0.0
    %307 = vmatpush1.msra.mxu0 0.0
    %308 = vmatprep.subr.mxu0 0.0
    %309 = vmatpush1.msra.mxu0 0.0
    %310 = vmatprep.subr.mxu0 0.0
    %311 = vmatpush1.msra.mxu0 0.0
    %312 = vmatprep.subr.mxu0 0.0
    %313 = vmatpush1.msra.mxu0 0.0
    %314 = vmatprep.subr.mxu0 0.0
    %315 = vmatpush1.msra.mxu0 0.0
    %316 = vmatprep.subr.mxu0 0.0
    %317 = vmatpush1.msra.mxu0 0.0
    %318 = vmatprep.subr.mxu0 0.0
    %319 = vmatpush1.msra.mxu0 0.0
    %320 = vmatprep.mubr.f32.mxu0 0.0
    %321 = vmatmul.mubr.f32.gmra.mrb[0].mxu0 %v232
    %v322 = vpop.f32.mrb[0].mxu0
    %v323 = vadd.f32 %v254, %v322
    %v324 = vpop.f32.mrb[0].mxu0
    %325 = vdwg.mxu0
    %v326 = vmax.f32 %v323, 0.0
    %v327 = vld [vmem:[#allocation6] sm:$0xff]
    %v328 = vld [vmem:[#allocation6 + $0x8] sm:$0xff]
    %v329 = vld [vmem:[#allocation6 + $0x10] sm:$0xff]
    %v330 = vld [vmem:[#allocation6 + $0x18] sm:$0xff]
    %v331 = vld [vmem:[#allocation6 + $0x20] sm:$0xff]
    %v332 = vld [vmem:[#allocation6 + $0x28] sm:$0xff]
    %v333 = vld [vmem:[#allocation6 + $0x30] sm:$0xff]
    %v334 = vld [vmem:[#allocation6 + $0x38] sm:$0xff]
    %v335 = vld [vmem:[#allocation6 + $0x40] sm:$0xff]
    %v336 = vld [vmem:[#allocation6 + $0x48] sm:$0xff]
    %v337 = vld [vmem:[#allocation6 + $0x50] sm:$0xff]
    %v338 = vld [vmem:[#allocation6 + $0x58] sm:$0xff]
    %v339 = vld [vmem:[#allocation6 + $0x60] sm:$0xff]
    %v340 = vld [vmem:[#allocation6 + $0x68] sm:$0xff]
    %v341 = vld [vmem:[#allocation6 + $0x70] sm:$0xff]
    %v342 = vld [vmem:[#allocation6 + $0x78] sm:$0xff]
    %v343 = vld [vmem:[%s7] sm:$0x1]
    %v345 = vlaneseq
    %v346 = vshrl.u32 %v345, 7
    %v347 = vsub.s32 0, %v346
    %v348 = vrot.slane %v343, %v347
    %350 = vmatprep.subr.mxu0 0.0
    %351 = vmatpush1.msra.mxu0 %v327
    %352 = vmatprep.subr.mxu0 0.0
    %353 = vmatpush1.msra.mxu0 %v328
    %354 = vmatprep.subr.mxu0 0.0
    %355 = vmatpush1.msra.mxu0 %v329
    %356 = vmatprep.subr.mxu0 0.0
    %357 = vmatpush1.msra.mxu0 %v330
    %358 = vmatprep.subr.mxu0 0.0
    %359 = vmatpush1.msra.mxu0 %v331
    %360 = vmatprep.subr.mxu0 0.0
    %361 = vmatpush1.msra.mxu0 %v332
    %362 = vmatprep.subr.mxu0 0.0
    %363 = vmatpush1.msra.mxu0 %v333
    %364 = vmatprep.subr.mxu0 0.0
    %365 = vmatpush1.msra.mxu0 %v334
    %366 = vmatprep.subr.mxu0 0.0
    %367 = vmatpush1.msra.mxu0 %v335
    %368 = vmatprep.subr.mxu0 0.0
    %369 = vmatpush1.msra.mxu0 %v336
    %370 = vmatprep.subr.mxu0 0.0
    %371 = vmatpush1.msra.mxu0 %v337
    %372 = vmatprep.subr.mxu0 0.0
    %373 = vmatpush1.msra.mxu0 %v338
    %374 = vmatprep.subr.mxu0 0.0
    %375 = vmatpush1.msra.mxu0 %v339
    %376 = vmatprep.subr.mxu0 0.0
    %377 = vmatpush1.msra.mxu0 %v340
    %378 = vmatprep.subr.mxu0 0.0
    %379 = vmatpush1.msra.mxu0 %v341
    %380 = vmatprep.subr.mxu0 0.0
    %381 = vmatpush1.msra.mxu0 %v342
    %382 = vmatprep.subr.mxu0 0.0
    %383 = vmatpush1.msra.mxu0 0.0
    %384 = vmatprep.subr.mxu0 0.0
    %385 = vmatpush1.msra.mxu0 0.0
    %386 = vmatprep.subr.mxu0 0.0
    %387 = vmatpush1.msra.mxu0 0.0
    %388 = vmatprep.subr.mxu0 0.0
    %389 = vmatpush1.msra.mxu0 0.0
    %390 = vmatprep.subr.mxu0 0.0
    %391 = vmatpush1.msra.mxu0 0.0
    %392 = vmatprep.subr.mxu0 0.0
    %393 = vmatpush1.msra.mxu0 0.0
    %394 = vmatprep.subr.mxu0 0.0
    %395 = vmatpush1.msra.mxu0 0.0
    %396 = vmatprep.subr.mxu0 0.0
    %397 = vmatpush1.msra.mxu0 0.0
    %398 = vmatprep.subr.mxu0 0.0
    %399 = vmatpush1.msra.mxu0 0.0
    %400 = vmatprep.subr.mxu0 0.0
    %401 = vmatpush1.msra.mxu0 0.0
    %402 = vmatprep.subr.mxu0 0.0
    %403 = vmatpush1.msra.mxu0 0.0
    %404 = vmatprep.subr.mxu0 0.0
    %405 = vmatpush1.msra.mxu0 0.0
    %406 = vmatprep.subr.mxu0 0.0
    %407 = vmatpush1.msra.mxu0 0.0
    %408 = vmatprep.subr.mxu0 0.0
    %409 = vmatpush1.msra.mxu0 0.0
    %410 = vmatprep.subr.mxu0 0.0
    %411 = vmatpush1.msra.mxu0 0.0
    %412 = vmatprep.subr.mxu0 0.0
    %413 = vmatpush1.msra.mxu0 0.0
    %414 = vmatprep.mubr.f32.mxu0 0.0
    %415 = vmatmul.mubr.f32.gmra.mrb[0].mxu0 %v326
    %v416 = vpop.f32.mrb[0].mxu0
    %v417 = vadd.f32 %v348, %v416
    %v418 = vpop.f32.mrb[0].mxu0
    %419 = vdwg.mxu0
    %v420 = vadd.f32 %v137, %v417
    %v421 = vld [vmem:[#allocation7] sm:$0xff]
    %v422 = vld [vmem:[#allocation7 + $0x8] sm:$0xff]
    %v423 = vld [vmem:[#allocation7 + $0x10] sm:$0xff]
    %v424 = vld [vmem:[#allocation7 + $0x18] sm:$0xff]
    %v425 = vld [vmem:[#allocation7 + $0x20] sm:$0xff]
    %v426 = vld [vmem:[#allocation7 + $0x28] sm:$0xff]
    %v427 = vld [vmem:[#allocation7 + $0x30] sm:$0xff]
    %v428 = vld [vmem:[#allocation7 + $0x38] sm:$0xff]
    %v429 = vld [vmem:[#allocation7 + $0x40] sm:$0xff]
    %v430 = vld [vmem:[#allocation7 + $0x48] sm:$0xff]
    %v431 = vld [vmem:[#allocation7 + $0x50] sm:$0xff]
    %v432 = vld [vmem:[#allocation7 + $0x58] sm:$0xff]
    %v433 = vld [vmem:[#allocation7 + $0x60] sm:$0xff]
    %v434 = vld [vmem:[#allocation7 + $0x68] sm:$0xff]
    %v435 = vld [vmem:[#allocation7 + $0x70] sm:$0xff]
    %v436 = vld [vmem:[#allocation7 + $0x78] sm:$0xff]
    %v437 = vld [vmem:[%s9] sm:$0x1]
    %v439 = vlaneseq
    %v440 = vshrl.u32 %v439, 7
    %v441 = vsub.s32 0, %v440
    %v442 = vrot.slane %v437, %v441
    %444 = vmatprep.subr.mxu0 0.0
    %445 = vmatpush1.msra.mxu0 %v421
    %446 = vmatprep.subr.mxu0 0.0
    %447 = vmatpush1.msra.mxu0 %v422
    %448 = vmatprep.subr.mxu0 0.0
    %449 = vmatpush1.msra.mxu0 %v423
    %450 = vmatprep.subr.mxu0 0.0
    %451 = vmatpush1.msra.mxu0 %v424
    %452 = vmatprep.subr.mxu0 0.0
    %453 = vmatpush1.msra.mxu0 %v425
    %454 = vmatprep.subr.mxu0 0.0
    %455 = vmatpush1.msra.mxu0 %v426
    %456 = vmatprep.subr.mxu0 0.0
    %457 = vmatpush1.msra.mxu0 %v427
    %458 = vmatprep.subr.mxu0 0.0
    %459 = vmatpush1.msra.mxu0 %v428
    %460 = vmatprep.subr.mxu0 0.0
    %461 = vmatpush1.msra.mxu0 %v429
    %462 = vmatprep.subr.mxu0 0.0
    %463 = vmatpush1.msra.mxu0 %v430
    %464 = vmatprep.subr.mxu0 0.0
    %465 = vmatpush1.msra.mxu0 %v431
    %466 = vmatprep.subr.mxu0 0.0
    %467 = vmatpush1.msra.mxu0 %v432
    %468 = vmatprep.subr.mxu0 0.0
    %469 = vmatpush1.msra.mxu0 %v433
    %470 = vmatprep.subr.mxu0 0.0
    %471 = vmatpush1.msra.mxu0 %v434
    %472 = vmatprep.subr.mxu0 0.0
    %473 = vmatpush1.msra.mxu0 %v435
    %474 = vmatprep.subr.mxu0 0.0
    %475 = vmatpush1.msra.mxu0 %v436
    %476 = vmatprep.subr.mxu0 0.0
    %477 = vmatpush1.msra.mxu0 0.0
    %478 = vmatprep.subr.mxu0 0.0
    %479 = vmatpush1.msra.mxu0 0.0
    %480 = vmatprep.subr.mxu0 0.0
    %481 = vmatpush1.msra.mxu0 0.0
    %482 = vmatprep.subr.mxu0 0.0
    %483 = vmatpush1.msra.mxu0 0.0
    %484 = vmatprep.subr.mxu0 0.0
    %485 = vmatpush1.msra.mxu0 0.0
    %486 = vmatprep.subr.mxu0 0.0
    %487 = vmatpush1.msra.mxu0 0.0
    %488 = vmatprep.subr.mxu0 0.0
    %489 = vmatpush1.msra.mxu0 0.0
    %490 = vmatprep.subr.mxu0 0.0
    %491 = vmatpush1.msra.mxu0 0.0
    %492 = vmatprep.subr.mxu0 0.0
    %493 = vmatpush1.msra.mxu0 0.0
    %494 = vmatprep.subr.mxu0 0.0
    %495 = vmatpush1.msra.mxu0 0.0
    %496 = vmatprep.subr.mxu0 0.0
    %497 = vmatpush1.msra.mxu0 0.0
    %498 = vmatprep.subr.mxu0 0.0
    %499 = vmatpush1.msra.mxu0 0.0
    %500 = vmatprep.subr.mxu0 0.0
    %501 = vmatpush1.msra.mxu0 0.0
    %502 = vmatprep.subr.mxu0 0.0
    %503 = vmatpush1.msra.mxu0 0.0
    %504 = vmatprep.subr.mxu0 0.0
    %505 = vmatpush1.msra.mxu0 0.0
    %506 = vmatprep.subr.mxu0 0.0
    %507 = vmatpush1.msra.mxu0 0.0
    %508 = vmatprep.mubr.f32.mxu0 0.0
    %509 = vmatmul.mubr.f32.gmra.mrb[0].mxu0 %v420
    %v510 = vpop.f32.mrb[0].mxu0
    %v511 = vadd.f32 %v442, %v510
    %v512 = vpop.f32.mrb[0].mxu0
    %513 = vdwg.mxu0
    %v514 = vmax.f32 %v511, 0.0
    %v515 = vld [vmem:[#allocation9] sm:$0xff]
    %v516 = vld [vmem:[#allocation9 + $0x8] sm:$0xff]
    %v517 = vld [vmem:[#allocation9 + $0x10] sm:$0xff]
    %v518 = vld [vmem:[#allocation9 + $0x18] sm:$0xff]
    %v519 = vld [vmem:[#allocation9 + $0x20] sm:$0xff]
    %v520 = vld [vmem:[#allocation9 + $0x28] sm:$0xff]
    %v521 = vld [vmem:[#allocation9 + $0x30] sm:$0xff]
    %v522 = vld [vmem:[#allocation9 + $0x38] sm:$0xff]
    %v523 = vld [vmem:[#allocation9 + $0x40] sm:$0xff]
    %v524 = vld [vmem:[#allocation9 + $0x48] sm:$0xff]
    %v525 = vld [vmem:[#allocation9 + $0x50] sm:$0xff]
    %v526 = vld [vmem:[#allocation9 + $0x58] sm:$0xff]
    %v527 = vld [vmem:[#allocation9 + $0x60] sm:$0xff]
    %v528 = vld [vmem:[#allocation9 + $0x68] sm:$0xff]
    %v529 = vld [vmem:[#allocation9 + $0x70] sm:$0xff]
    %v530 = vld [vmem:[#allocation9 + $0x78] sm:$0xff]
    %v531 = vld [vmem:[%s11] sm:$0x1]
    %v533 = vlaneseq
    %v534 = vshrl.u32 %v533, 7
    %v535 = vsub.s32 0, %v534
    %v536 = vrot.slane %v531, %v535
    %538 = vmatprep.subr.mxu0 0.0
    %539 = vmatpush1.msra.mxu0 %v515
    %540 = vmatprep.subr.mxu0 0.0
    %541 = vmatpush1.msra.mxu0 %v516
    %542 = vmatprep.subr.mxu0 0.0
    %543 = vmatpush1.msra.mxu0 %v517
    %544 = vmatprep.subr.mxu0 0.0
    %545 = vmatpush1.msra.mxu0 %v518
    %546 = vmatprep.subr.mxu0 0.0
    %547 = vmatpush1.msra.mxu0 %v519
    %548 = vmatprep.subr.mxu0 0.0
    %549 = vmatpush1.msra.mxu0 %v520
    %550 = vmatprep.subr.mxu0 0.0
    %551 = vmatpush1.msra.mxu0 %v521
    %552 = vmatprep.subr.mxu0 0.0
    %553 = vmatpush1.msra.mxu0 %v522
    %554 = vmatprep.subr.mxu0 0.0
    %555 = vmatpush1.msra.mxu0 %v523
    %556 = vmatprep.subr.mxu0 0.0
    %557 = vmatpush1.msra.mxu0 %v524
    %558 = vmatprep.subr.mxu0 0.0
    %559 = vmatpush1.msra.mxu0 %v525
    %560 = vmatprep.subr.mxu0 0.0
    %561 = vmatpush1.msra.mxu0 %v526
    %562 = vmatprep.subr.mxu0 0.0
    %563 = vmatpush1.msra.mxu0 %v527
    %564 = vmatprep.subr.mxu0 0.0
    %565 = vmatpush1.msra.mxu0 %v528
    %566 = vmatprep.subr.mxu0 0.0
    %567 = vmatpush1.msra.mxu0 %v529
    %568 = vmatprep.subr.mxu0 0.0
    %569 = vmatpush1.msra.mxu0 %v530
    %570 = vmatprep.subr.mxu0 0.0
    %571 = vmatpush1.msra.mxu0 0.0
    %572 = vmatprep.subr.mxu0 0.0
    %573 = vmatpush1.msra.mxu0 0.0
    %574 = vmatprep.subr.mxu0 0.0
    %575 = vmatpush1.msra.mxu0 0.0
    %576 = vmatprep.subr.mxu0 0.0
    %577 = vmatpush1.msra.mxu0 0.0
    %578 = vmatprep.subr.mxu0 0.0
    %579 = vmatpush1.msra.mxu0 0.0
    %580 = vmatprep.subr.mxu0 0.0
    %581 = vmatpush1.msra.mxu0 0.0
    %582 = vmatprep.subr.mxu0 0.0
    %583 = vmatpush1.msra.mxu0 0.0
    %584 = vmatprep.subr.mxu0 0.0
    %585 = vmatpush1.msra.mxu0 0.0
    %586 = vmatprep.subr.mxu0 0.0
    %587 = vmatpush1.msra.mxu0 0.0
    %588 = vmatprep.subr.mxu0 0.0
    %589 = vmatpush1.msra.mxu0 0.0
    %590 = vmatprep.subr.mxu0 0.0
    %591 = vmatpush1.msra.mxu0 0.0
    %592 = vmatprep.subr.mxu0 0.0
    %593 = vmatpush1.msra.mxu0 0.0
    %594 = vmatprep.subr.mxu0 0.0
    %595 = vmatpush1.msra.mxu0 0.0
    %596 = vmatprep.subr.mxu0 0.0
    %597 = vmatpush1.msra.mxu0 0.0
    %598 = vmatprep.subr.mxu0 0.0
    %599 = vmatpush1.msra.mxu0 0.0
    %600 = vmatprep.subr.mxu0 0.0
    %601 = vmatpush1.msra.mxu0 0.0
    %602 = vmatprep.mubr.f32.mxu0 0.0
    %603 = vmatmul.mubr.f32.gmra.mrb[0].mxu0 %v514
    %v604 = vpop.f32.mrb[0].mxu0
    %v605 = vadd.f32 %v536, %v604
    %v606 = vpop.f32.mrb[0].mxu0
    %607 = vdwg.mxu0
    %v608 = vmax.f32 %v605, 0.0
    %v609 = vld [vmem:[#allocation10] sm:$0xff]
    %v610 = vld [vmem:[#allocation10 + $0x8] sm:$0xff]
    %v611 = vld [vmem:[#allocation10 + $0x10] sm:$0xff]
    %v612 = vld [vmem:[#allocation10 + $0x18] sm:$0xff]
    %v613 = vld [vmem:[#allocation10 + $0x20] sm:$0xff]
    %v614 = vld [vmem:[#allocation10 + $0x28] sm:$0xff]
    %v615 = vld [vmem:[#allocation10 + $0x30] sm:$0xff]
    %v616 = vld [vmem:[#allocation10 + $0x38] sm:$0xff]
    %v617 = vld [vmem:[#allocation10 + $0x40] sm:$0xff]
    %v618 = vld [vmem:[#allocation10 + $0x48] sm:$0xff]
    %v619 = vld [vmem:[#allocation10 + $0x50] sm:$0xff]
    %v620 = vld [vmem:[#allocation10 + $0x58] sm:$0xff]
    %v621 = vld [vmem:[#allocation10 + $0x60] sm:$0xff]
    %v622 = vld [vmem:[#allocation10 + $0x68] sm:$0xff]
    %v623 = vld [vmem:[#allocation10 + $0x70] sm:$0xff]
    %v624 = vld [vmem:[#allocation10 + $0x78] sm:$0xff]
    %v625 = vld [vmem:[%s13] sm:$0x1]
    %v627 = vlaneseq
    %v628 = vshrl.u32 %v627, 7
    %v629 = vsub.s32 0, %v628
    %v630 = vrot.slane %v625, %v629
    %632 = vmatprep.subr.mxu0 0.0
    %633 = vmatpush1.msra.mxu0 %v609
    %634 = vmatprep.subr.mxu0 0.0
    %635 = vmatpush1.msra.mxu0 %v610
    %636 = vmatprep.subr.mxu0 0.0
    %637 = vmatpush1.msra.mxu0 %v611
    %638 = vmatprep.subr.mxu0 0.0
    %639 = vmatpush1.msra.mxu0 %v612
    %640 = vmatprep.subr.mxu0 0.0
    %641 = vmatpush1.msra.mxu0 %v613
    %642 = vmatprep.subr.mxu0 0.0
    %643 = vmatpush1.msra.mxu0 %v614
    %644 = vmatprep.subr.mxu0 0.0
    %645 = vmatpush1.msra.mxu0 %v615
    %646 = vmatprep.subr.mxu0 0.0
    %647 = vmatpush1.msra.mxu0 %v616
    %648 = vmatprep.subr.mxu0 0.0
    %649 = vmatpush1.msra.mxu0 %v617
    %650 = vmatprep.subr.mxu0 0.0
    %651 = vmatpush1.msra.mxu0 %v618
    %652 = vmatprep.subr.mxu0 0.0
    %653 = vmatpush1.msra.mxu0 %v619
    %654 = vmatprep.subr.mxu0 0.0
    %655 = vmatpush1.msra.mxu0 %v620
    %656 = vmatprep.subr.mxu0 0.0
    %657 = vmatpush1.msra.mxu0 %v621
    %658 = vmatprep.subr.mxu0 0.0
    %659 = vmatpush1.msra.mxu0 %v622
    %660 = vmatprep.subr.mxu0 0.0
    %661 = vmatpush1.msra.mxu0 %v623
    %662 = vmatprep.subr.mxu0 0.0
    %663 = vmatpush1.msra.mxu0 %v624
    %664 = vmatprep.subr.mxu0 0.0
    %665 = vmatpush1.msra.mxu0 0.0
    %666 = vmatprep.subr.mxu0 0.0
    %667 = vmatpush1.msra.mxu0 0.0
    %668 = vmatprep.subr.mxu0 0.0
    %669 = vmatpush1.msra.mxu0 0.0
    %670 = vmatprep.subr.mxu0 0.0
    %671 = vmatpush1.msra.mxu0 0.0
    %672 = vmatprep.subr.mxu0 0.0
    %673 = vmatpush1.msra.mxu0 0.0
    %674 = vmatprep.subr.mxu0 0.0
    %675 = vmatpush1.msra.mxu0 0.0
    %676 = vmatprep.subr.mxu0 0.0
    %677 = vmatpush1.msra.mxu0 0.0
    %678 = vmatprep.subr.mxu0 0.0
    %679 = vmatpush1.msra.mxu0 0.0
    %680 = vmatprep.subr.mxu0 0.0
    %681 = vmatpush1.msra.mxu0 0.0
    %682 = vmatprep.subr.mxu0 0.0
    %683 = vmatpush1.msra.mxu0 0.0
    %684 = vmatprep.subr.mxu0 0.0
    %685 = vmatpush1.msra.mxu0 0.0
    %686 = vmatprep.subr.mxu0 0.0
    %687 = vmatpush1.msra.mxu0 0.0
    %688 = vmatprep.subr.mxu0 0.0
    %689 = vmatpush1.msra.mxu0 0.0
    %690 = vmatprep.subr.mxu0 0.0
    %691 = vmatpush1.msra.mxu0 0.0
    %692 = vmatprep.subr.mxu0 0.0
    %693 = vmatpush1.msra.mxu0 0.0
    %694 = vmatprep.subr.mxu0 0.0
    %695 = vmatpush1.msra.mxu0 0.0
    %696 = vmatprep.mubr.f32.mxu0 0.0
    %697 = vmatmul.mubr.f32.gmra.mrb[0].mxu0 %v608
    %v698 = vpop.f32.mrb[0].mxu0
    %v699 = vadd.f32 %v630, %v698
    %v700 = vpop.f32.mrb[0].mxu0
    %701 = vdwg.mxu0
    %v702 = vadd.f32 %v138, %v699
    %v703 = vld [vmem:[%s14] sm:$0x1]
    %v705 = vlaneseq
    %v706 = vshrl.u32 %v705, 7
    %v707 = vsub.s32 0, %v706
    %v708 = vrot.slane %v703, %v707
    %v710 = vmul.f32 %v420, %v708
    %711 = vst [vmem:[%s16] sm:$0xff] %v710
    %v712 = vld [vmem:[%s15] sm:$0x1]
    %v714 = vlaneseq
    %v715 = vshrl.u32 %v714, 7
    %v716 = vsub.s32 0, %v715
    %v717 = vrot.slane %v712, %v716
    %v719 = vmul.f32 %v702, %v717
    %720 = vst [vmem:[%s17] sm:$0xff] %v719
    // Predicated region
    $region90: #{_forward.1} parent=1 // pred_check
      _
    $region91: #{_forward.1} parent=1 // pred_check_branch
      %722 = sbr.rel (0) target = $region93
    $region92: #{_forward.1} parent=1 // pred_region
      _
    $region93: #{_forward.1} parent=1 // pred_fallthru
      _
    // Predicated region
    $region94: #{_forward.1} parent=1 // pred_check
      _
    $region95: #{_forward.1} parent=1 // pred_check_branch
      %724 = sbr.rel (0) target = $region97
    $region96: #{_forward.1} parent=1 // pred_region
      _
    $region97: #{_forward.1} parent=1 // pred_fallthru
      _
    // Predicated region
    $region98: #{_forward.1} parent=1 // pred_check
      _
    $region99: #{_forward.1} parent=1 // pred_check_branch
      %726 = sbr.rel (0) target = $region101
    $region100: #{_forward.1} parent=1 // pred_region
      _
    $region101: #{_forward.1} parent=1 // pred_fallthru
      _
    // Predicated region
    $region102: #{_forward.1} parent=1 // pred_check
      _
    $region103: #{_forward.1} parent=1 // pred_check_branch
      %728 = sbr.rel (0) target = $region105
    $region104: #{_forward.1} parent=1 // pred_region
      _
    $region105: #{_forward.1} parent=1 // pred_fallthru
      _
    %729 = vsyncpa [#allocation3], 1
    %730 = vsyncpa [#allocation5], 1
    %731 = vsyncpa [#allocation8], 1
    %732 = vsyncpa [#allocation11], 1

</llo_original>
